<compile_context>
chip_gen: v5e
topology: v5e:2x2
jax: 0.10.0
libtpu: 0.0.40
codegen_flags: <defaults>
</compile_context>

<pallas_src>
from functools import partial

import jax
import jax.numpy as jnp
from jax.experimental import pallas as pl
from jax.experimental.pallas import tpu as pltpu

LANE = 128
SUBLANE = 8


def _round_up(n, m):
    return ((n + m - 1) // m) * m


def mlp_kernel(x_ref, w_ref, b_ref, o_ref):
    # Single fused affine: o = x @ W + b  (W, b folded & lane-padded in wrapper).
    # x arrives f32 (no extra HBM pass in the wrapper); cast to bf16 here for
    # the MXU, accumulate in f32, add f32 bias, store in o_ref.dtype.
    x_bf = x_ref[...].astype(jnp.bfloat16)
    o_ref[...] = (
        jnp.dot(x_bf, w_ref[...], preferred_element_type=jnp.float32)
        + b_ref[...]
    ).astype(o_ref.dtype)


@partial(jax.jit, static_argnames=("batch_tile", "out_dtype", "return_padded"))
def mlp_forward(x, w1, b1, w2, b2, *, batch_tile=1024,
                out_dtype=jnp.float32, return_padded=False):
    """Forward of mlp: linear2(linear1(x)) with no activation.

    x:  (B, 64) float32
    w1: (64, 32), b1: (1, 32), w2: (32, num_class), b2: (1, num_class)
    Returns (B, num_class) in out_dtype, or the lane-padded (B, n_pad) buffer
    if return_padded=True (columns >= num_class are zero).
    """
    B, d_in = x.shape
    num_class = w2.shape[1]

    # ---- Fold the two bias-only linears into one affine (exact: no activation
    # between linear1 and linear2 in the original module). ----
    w = (w1 @ w2).astype(jnp.float32)        # (64, num_class)
    b = (b1 @ w2 + b2).astype(jnp.float32)   # (1,  num_class)

    # ---- Lane-dense output: pad num_class up to a 128 multiple. ----
    n_pad = _round_up(max(num_class, LANE), LANE)
    w_p = (jnp.zeros((d_in, n_pad), jnp.float32)
           .at[:, :num_class].set(w)
           .astype(jnp.bfloat16))                       # bf16 MXU weight (tiny, resident)
    b_p = jnp.zeros((1, n_pad), jnp.float32).at[:, :num_class].set(b)

    # ---- Batch tiling: tile is a multiple of 8 (sublane); no padding/copy of x,
    # partial last block handled by Pallas boundary masking.  Cap the tile at
    # roughly half the batch when splittable so the "parallel" axis gives both
    # v7x TensorCores work. ----
    b8 = _round_up(B, SUBLANE)
    tb = min(batch_tile, b8)
    if b8 > SUBLANE:
        tb = min(tb, _round_up(pl.cdiv(b8, 2), SUBLANE))
    tb = max(_round_up(tb, SUBLANE), SUBLANE)
    grid = (pl.cdiv(B, tb),)

    out = pl.pallas_call(
        mlp_kernel,
        out_shape=jax.ShapeDtypeStruct((B, n_pad), out_dtype),
        grid=grid,
        in_specs=[
            # x batch tile (f32, cast in-kernel).  If DMA ever shows up exposed
            # at small tiles, try pipeline_mode=pl.Buffered(3) here.
            pl.BlockSpec((tb, d_in), lambda i: (i, 0)),
            pl.BlockSpec((d_in, n_pad), lambda i: (0, 0)),   # folded W (resident)
            pl.BlockSpec((1, n_pad), lambda i: (0, 0)),      # folded b (resident)
        ],
        out_specs=pl.BlockSpec((tb, n_pad), lambda i: (i, 0)),
        compiler_params=pltpu.CompilerParams(
            dimension_semantics=("parallel",),
        ),
    )(x, w_p, b_p)

    if return_padded:
        return out
    # Column slice stays inside jit so it can fuse with downstream consumers.
    return out[:, :num_class]


if __name__ == "__main__":
    num_class = 10
    B = 8
    key = jax.random.PRNGKey(0)
    kx, k1, k2, k3, k4 = jax.random.split(key, 5)

    # Deterministic synthetic parameters; (in, out) layout == W^T vs torch.
    x = jax.random.normal(kx, (B, 64), dtype=jnp.float32)
    w1 = jax.random.normal(k1, (64, 32), dtype=jnp.float32) * 0.1
    b1 = jax.random.normal(k2, (1, 32), dtype=jnp.float32) * 0.1
    w2 = jax.random.normal(k3, (32, num_class), dtype=jnp.float32) * 0.1
    b2 = jax.random.normal(k4, (1, num_class), dtype=jnp.float32) * 0.1

    out = mlp_forward(x, w1, b1, w2, b2)
    jax.block_until_ready(out)

    # Reference in plain f32 JAX (two separate linears, as in the PyTorch module).
    ref = (x @ w1 + b1) @ w2 + b2
    assert out.shape == (B, num_class)
    # bf16 MXU inputs (cast in-kernel) with f32 accumulation -> slightly looser tolerance.
    assert jnp.allclose(out, ref, atol=2e-2, rtol=2e-2), float(
        jnp.max(jnp.abs(out - ref))
    )

    print("KERNEL_OK")
</pallas_src>

<mosaic_0001>
module attributes {stable_mosaic.version = 11 : i64} {
  func.func @mlp_kernel(%arg0: i32, %arg1: memref<8x64xf32, #tpu.memory_space<vmem>>, %arg2: memref<64x128xbf16, #tpu.memory_space<vmem>>, %arg3: memref<1x128xf32, #tpu.memory_space<vmem>>, %arg4: memref<8x128xf32, #tpu.memory_space<vmem>>) attributes {dimension_semantics = [#tpu.dimension_semantics<parallel>], iteration_bounds = array<i64: 1>, scalar_prefetch = 0 : i64, scratch_operands = 0 : i64, tpu.core_type = #tpu.core_type<tc>, window_params = [{transform_indices = @transform_0, window_bounds = array<i64: 8, 64>}, {pipeline_mode = #tpu.pipeline_mode<synchronous>, transform_indices = @transform_1, window_bounds = array<i64: 64, 128>}, {pipeline_mode = #tpu.pipeline_mode<synchronous>, transform_indices = @transform_2, window_bounds = array<i64: 1, 128>}, {transform_indices = @transform_3, window_bounds = array<i64: 8, 128>}]} {
    %c0 = arith.constant 0 : index
    %c0_0 = arith.constant 0 : index
    %0 = vector.load %arg1[%c0, %c0_0] : memref<8x64xf32, #tpu.memory_space<vmem>>, vector<8x64xf32>
    %1 = arith.truncf %0 : vector<8x64xf32> to vector<8x64xbf16>
    %c0_1 = arith.constant 0 : index
    %c0_2 = arith.constant 0 : index
    %2 = vector.load %arg2[%c0_1, %c0_2] : memref<64x128xbf16, #tpu.memory_space<vmem>>, vector<64x128xbf16>
    %cst = arith.constant dense<0.000000e+00> : vector<8x128xf32>
    %3 = tpu.matmul %1, %2, %cst {dimension_numbers = #tpu.dot_dimension_numbers<[1], [0], [0], [1], [0, 0, 1, 1], [], []>} : vector<8x64xbf16>, vector<64x128xbf16>, vector<8x128xf32> -> vector<8x128xf32>
    %c0_3 = arith.constant 0 : index
    %c0_4 = arith.constant 0 : index
    %4 = vector.load %arg3[%c0_3, %c0_4] : memref<1x128xf32, #tpu.memory_space<vmem>>, vector<1x128xf32>
    %5 = vector.broadcast %4 : vector<1x128xf32> to vector<8x128xf32>
    %6 = arith.addf %3, %5 : vector<8x128xf32>
    %c0_5 = arith.constant 0 : index
    %c0_6 = arith.constant 0 : index
    %7 = vector.load %arg4[%c0_5, %c0_6] : memref<8x128xf32, #tpu.memory_space<vmem>>, vector<8x128xf32>
    tpu.vector_store %arg4[%c0_5, %c0_6], %6 {strides = array<i32>} : memref<8x128xf32, #tpu.memory_space<vmem>>, vector<8x128xf32>,
    return
  }
  func.func @transform_0(%arg0: i32) -> (i32, i32) {
    %c0_i32 = arith.constant 0 : i32
    %c0_i32_0 = arith.constant 0 : i32
    return %arg0, %c0_i32 : i32, i32
  }
  func.func @transform_1(%arg0: i32) -> (i32, i32) {
    %c0_i32 = arith.constant 0 : i32
    %c0_i32_0 = arith.constant 0 : i32
    %c0_i32_1 = arith.constant 0 : i32
    return %c0_i32, %c0_i32_0 : i32, i32
  }
  func.func @transform_2(%arg0: i32) -> (i32, i32) {
    %c0_i32 = arith.constant 0 : i32
    %c0_i32_0 = arith.constant 0 : i32
    %c0_i32_1 = arith.constant 0 : i32
    return %c0_i32, %c0_i32_0 : i32, i32
  }
  func.func @transform_3(%arg0: i32) -> (i32, i32) {
    %c0_i32 = arith.constant 0 : i32
    %c0_i32_0 = arith.constant 0 : i32
    return %arg0, %c0_i32 : i32, i32
  }
}

</mosaic_0001>

<llo_original>
// kernel: mlp_forward.1
$region0: #{mlp_forward.1}
  #allocation0 [shape = 'u32[]', space=smem, size = 0x4, offset = 0x4, fixed_abs, tag = 'smem constant byte address 0x4 - core index']
  #allocation1 [shape = 'u32[72,128]{1,0:T(1,128)}', space=vmem, size = 0x9000, scoped, tag = 'internal scratch']
  %s0 = inlined_call_operand.vmem [shape: f32[8,64], index: 0, kind: input, shape index: {}]
  %s1 = inlined_call_operand.vmem [shape: bf16[64,128], index: 1, kind: input, shape index: {}]
  %s2 = inlined_call_operand.vmem [shape: f32[1,128], index: 2, kind: input, shape index: {}]
  %s3 = inlined_call_operand.hbm [shape: f32[8,128], index: 3, kind: output, shape index: {}]
  %s4 = sld [smem:[#allocation0]]
  $region22: #{mlp_forward.1} parent=0
    _
  %s6 = ssub.s32 1, %s4
  %s7 = scalar_select 0, %s6, %s4
  $region1: #{mlp_forward.1} parent=0
    #allocation2 [shape = 'u8[4096]{0}', space=vmem, size = 0x1000, scoped, tag = 'output window, operand 0, single buffered']
    #allocation3 [shape = 's32[1]{0}', space=sflag, size = 0x4, scoped, tag = 'scoped memory for mlp_forward.1']
    %8 = vsyncpa [#allocation3], 0
    // Predicated region
    $region2: #{mlp_forward.1} parent=1 // pred_check
      _
    $region3: #{mlp_forward.1} parent=1 // pred_check_branch
      %10 = sbr.rel (0) target = $region5
    $region4: #{mlp_forward.1} parent=1 // pred_region
      _
    $region5: #{mlp_forward.1} parent=1 // pred_fallthru
      _
    // Predicated region
    $region6: #{mlp_forward.1} parent=1 // pred_check
      _
    $region7: #{mlp_forward.1} parent=1 // pred_check_branch
      %12 = sbr.rel (0) target = $region9
    $region8: #{mlp_forward.1} parent=1 // pred_region
      _
    $region9: #{mlp_forward.1} parent=1 // pred_fallthru
      _
    // Predicated region
    $region10: #{mlp_forward.1} parent=1 // pred_check
      _
    $region11: #{mlp_forward.1} parent=1 // pred_check_branch
      %14 = sbr.rel (0) target = $region13
    $region12: #{mlp_forward.1} parent=1 // pred_region
      _
    $region13: #{mlp_forward.1} parent=1 // pred_fallthru
      _
    %v16 = vld [vmem:[%s0] sm:$0xff]
    %v17 = vpack.c.bf16 %v16, %v16
    %v18 = vld [vmem:[%s1] sm:$0xf]
    %v19 = vld [vmem:[%s1 + $0x4] sm:$0xf]
    %v20 = vld [vmem:[%s1 + $0x8] sm:$0xf]
    %v21 = vld [vmem:[%s1 + $0xc] sm:$0xf]
    %v22 = vld [vmem:[%s1 + $0x10] sm:$0xf]
    %v23 = vld [vmem:[%s1 + $0x14] sm:$0xf]
    %v24 = vld [vmem:[%s1 + $0x18] sm:$0xf]
    %v25 = vld [vmem:[%s1 + $0x1c] sm:$0xf]
    %v26 = vld [vmem:[%s2] sm:$0x1]
    %v28 = vperm.slane %v26, 0
    %v38 = vunpack.c.l.b16 %v18
    %v39 = vunpack.c.l.b16 %v19
    %v40 = vunpack.c.l.b16 %v20
    %v41 = vunpack.c.l.b16 %v21
    %v42 = vunpack.c.l.b16 %v22
    %v43 = vunpack.c.l.b16 %v23
    %v44 = vunpack.c.l.b16 %v24
    %v45 = vunpack.c.l.b16 %v25
    %v46 = vpack.c.b16 %v39, %v38
    %v47 = vpack.c.b16 %v41, %v40
    %v48 = vpack.c.b16 %v43, %v42
    %v49 = vpack.c.b16 %v45, %v44
    %vm54 = vcmask 523264
    %v56 = vsel %vm54, %v17, 0
    %58 = vmatpush.bf16.msra.mxu0 0
    %59 = vmatpush.bf16.msra.mxu0 0
    %60 = vmatpush.bf16.msra.mxu0 0
    %61 = vmatpush.bf16.msra.mxu0 0
    %62 = vmatpush.bf16.msra.mxu0 %v49
    %63 = vmatpush.bf16.msra.mxu0 %v48
    %64 = vmatpush.bf16.msra.mxu0 %v47
    %65 = vmatpush.bf16.msra.mxu0 %v46
    %66 = vmatmul.bf16.gmra.mxu0 %v56
    %v67 = vpop.f32.mrf.mxu0
    %v68 = vadd.f32 %v28, %v67
    %v69 = vpop.f32.mrf.mxu0
    %70 = vdwg.mxu0
    %71 = vst [vmem:[#allocation2] sm:$0xff] %v68
    // Predicated region
    $region14: #{mlp_forward.1} parent=1 // pred_check
      _
    $region15: #{mlp_forward.1} parent=1 // pred_check_branch
      %73 = sbr.rel (0) target = $region17
    $region16: #{mlp_forward.1} parent=1 // pred_region
      %75 = vsyncadd [#allocation3], 0
      %s77 = sshll.u32 [#allocation2], 4
      %s78 = int_to_ptr.vmem [resolvable:$true] %s77
      %s79 = sshll.u32 %s3, 4
      %s80 = int_to_ptr.hbm [resolvable:$true] %s79
      %82 = dma.vmem_to_hbm [thread:$0]  %s78, 128, %s80, [#allocation3]
    $region17: #{mlp_forward.1} parent=1 // pred_fallthru
      _
    // Predicated region
    $region18: #{mlp_forward.1} parent=1 // pred_check
      _
    $region19: #{mlp_forward.1} parent=1 // pred_check_branch
      %84 = sbr.rel (0) target = $region21
    $region20: #{mlp_forward.1} parent=1 // pred_region
      %86 = dma.done [#allocation3], 128
    $region21: #{mlp_forward.1} parent=1 // pred_fallthru
      _
    %87 = vsyncpa [#allocation3], 1

</llo_original>
